<compile_context>
chip_gen: v7x
topology: tpu7x:2x2x1
jax: 0.10.0
libtpu: 0.0.40
codegen_flags: <defaults>
</compile_context>

<pallas_src>
import math

import jax
import jax.numpy as jnp
from jax.experimental import pallas as pl
from jax.experimental.pallas import tpu as pltpu


def _kmean_attn_kernel(x_ref,
                       wq_ref, bq_ref,
                       kbd_ref, pv_ref,
                       wo_ref, bo_ref,
                       g1_ref, be1_ref,
                       w1_ref, b1_ref, w2_ref, b2_ref,
                       gm_ref, bm_ref,
                       out_ref):
    x = x_ref[...]                                                        # (TR, E)
    E = x.shape[-1]

    # ---- q projection (1/sqrt(d) already folded into Wq/bq) ----
    q = jnp.dot(x, wq_ref[...], preferred_element_type=jnp.float32) + bq_ref[...]

    # ---- scores vs block-diagonal K^T: per-head score blocks side by side ----
    s = jnp.dot(q, kbd_ref[...], preferred_element_type=jnp.float32)     # (TR, H*C)

    # Exact per-head softmax: shift by the global row max (shift-invariant per
    # segment); per-head denominators come out of the fused PV matmul below.
    s = s - jnp.max(s, axis=-1, keepdims=True)
    p = jnp.exp(s)

    # ---- fused [P @ V_blockstack | P @ 1_seg]: (TR, H*C) @ (H*C, 2E) ----
    pv = jnp.dot(p, pv_ref[...], preferred_element_type=jnp.float32)     # (TR, 2E)
    # heads are already recombined into contiguous columns; normalize exactly
    o = pv[:, :E] / pv[:, E:]                                            # (TR, E)

    attn = jnp.dot(o, wo_ref[...], preferred_element_type=jnp.float32) + bo_ref[...]

    # ---- residual + LayerNorm1 ----
    h1 = x + attn
    mu = jnp.mean(h1, axis=-1, keepdims=True)
    var = jnp.mean((h1 - mu) ** 2, axis=-1, keepdims=True)
    h1n = (h1 - mu) * jax.lax.rsqrt(var + 1e-5) * g1_ref[...] + be1_ref[...]

    # ---- MLPBlock: lin2(relu(lin1(x))) + skip, then LayerNorm ----
    m = jnp.dot(h1n, w1_ref[...], preferred_element_type=jnp.float32) + b1_ref[...]
    m = jnp.maximum(m, 0.0)
    m = jnp.dot(m, w2_ref[...], preferred_element_type=jnp.float32) + b2_ref[...]
    y = h1n + m
    mu2 = jnp.mean(y, axis=-1, keepdims=True)
    var2 = jnp.mean((y - mu2) ** 2, axis=-1, keepdims=True)
    yn = (y - mu2) * jax.lax.rsqrt(var2 + 1e-5) * gm_ref[...] + bm_ref[...]

    # Output last dim is E (=32 < 128) -> masked stores; negligible at these
    # sizes.  For production R, a lane-dense (R*E/128, 128) output slab is the
    # next lever if the store epilogue ever shows up.
    out_ref[...] = yn.astype(out_ref.dtype)


def prepare_kmean_attention_params(params, *, num_heads):
    """One-time parameter preparation (hoisted out of the per-forward path).

    Everything here depends only on module parameters, never on the input:
      * fold the 1/sqrt(d) attention scale into the q projection,
      * project the learned cluster centers to K and V once,
      * lay K out block-diagonally (E, H*C) and V block-stacked (H*C, E) so the
        in-kernel attention core is three lane-dense 2-D matmuls,
      * append a block-ones matrix so P @ [V | 1_seg] also yields the per-head
        softmax denominators, already broadcast to d columns each.
    """
    E = params["wq"].shape[0]
    H = num_heads
    d = E // H
    C = params["cc"].shape[0]
    scale = 1.0 / math.sqrt(d)

    wq_s = (params["wq"] * scale).astype(jnp.float32)
    bq_s = (params["bq"] * scale).astype(jnp.float32)

    # keys / values are projections of the learned cluster centers only
    k = params["cc"] @ params["wk"] + params["bk"]        # (C, E)
    v = params["cc"] @ params["wv"] + params["bv"]        # (C, E)

    k_bd = jnp.zeros((E, H * C), jnp.float32)             # block-diagonal K^T
    v_stk = jnp.zeros((H * C, E), jnp.float32)            # block-stacked V
    seg_1 = jnp.zeros((H * C, E), jnp.float32)            # per-head ones blocks
    for h in range(H):
        k_bd = k_bd.at[h * d:(h + 1) * d, h * C:(h + 1) * C].set(
            k[:, h * d:(h + 1) * d].T)
        v_stk = v_stk.at[h * C:(h + 1) * C, h * d:(h + 1) * d].set(
            v[:, h * d:(h + 1) * d])
        seg_1 = seg_1.at[h * C:(h + 1) * C, h * d:(h + 1) * d].set(1.0)
    pv_mat = jnp.concatenate([v_stk, seg_1], axis=1)      # (H*C, 2E)

    return dict(
        cc=params["cc"],
        wq_s=wq_s, bq_s=bq_s, k_bd=k_bd, pv_mat=pv_mat,
        wo=params["wo"], bo=params["bo"],
        g1=params["g1"], be1=params["be1"],
        w1=params["w1"], b1=params["b1"],
        w2=params["w2"], b2=params["b2"],
        gm=params["gm"], bm=params["bm"],
    )


def kmean_attention_block(bbox_features, prepared, *, row_tile=256):
    """Fused KMeanAttentionBlock forward.

    Returns (updated_clusters.squeeze(), cluster_centers), matching the module.
    """
    B, N, E = bbox_features.shape
    R = B * N
    x2d = bbox_features.reshape(R, E)

    # Row-parallel grid: single step at tiny R; row-sharded (v7x dual-TC) at
    # production R.  row_tile is a multiple of 8 (sublanes) by construction.
    tr = R if R <= row_tile else row_tile
    r_pad = ((R + tr - 1) // tr) * tr
    if r_pad != R:
        x2d = jnp.pad(x2d, ((0, r_pad - R), (0, 0)))
    nr = r_pad // tr

    rows = lambda i: (i, 0)
    whole = lambda i: (0, 0)
    full = lambda a: pl.BlockSpec(a.shape, whole)   # resident weight block
    p = prepared

    out2d = pl.pallas_call(
        _kmean_attn_kernel,
        out_shape=jax.ShapeDtypeStruct((r_pad, E), bbox_features.dtype),
        grid_spec=pltpu.PrefetchScalarGridSpec(
            num_scalar_prefetch=0,
            grid=(nr,),
            in_specs=[
                pl.BlockSpec((tr, E), rows),
                full(p["wq_s"]), full(p["bq_s"]),
                full(p["k_bd"]), full(p["pv_mat"]),
                full(p["wo"]), full(p["bo"]),
                full(p["g1"]), full(p["be1"]),
                full(p["w1"]), full(p["b1"]),
                full(p["w2"]), full(p["b2"]),
                full(p["gm"]), full(p["bm"]),
            ],
            out_specs=pl.BlockSpec((tr, E), rows),
        ),
        compiler_params=pltpu.CompilerParams(
            dimension_semantics=("parallel",)),
    )(x2d,
      p["wq_s"], p["bq_s"], p["k_bd"], p["pv_mat"],
      p["wo"], p["bo"], p["g1"], p["be1"],
      p["w1"], p["b1"], p["w2"], p["b2"],
      p["gm"], p["bm"])

    out = out2d[:R].reshape(B, N, E)
    # module returns (updated_clusters.squeeze(), cluster_centers)
    return jnp.squeeze(out), p["cc"]


def _reference(bbox_features, params, *, num_heads):
    """Pure-JAX reference replicating the PyTorch forward (eval mode)."""
    x = bbox_features
    cc = params["cc"]
    B, N, E = x.shape
    d = E // num_heads

    q = x @ params["wq"] + params["bq"]
    k = cc @ params["wk"] + params["bk"]
    v = cc @ params["wv"] + params["bv"]

    qh = q.reshape(B, N, num_heads, d).transpose(0, 2, 1, 3)             # (B,H,N,d)
    kh = k.reshape(1, -1, num_heads, d).transpose(0, 2, 1, 3)            # (1,H,C,d)
    vh = v.reshape(1, -1, num_heads, d).transpose(0, 2, 1, 3)            # (1,H,C,d)
    s = jnp.einsum("bhnd,ohcd->bhnc", qh, kh) / math.sqrt(d)
    p = jax.nn.softmax(s, axis=-1)
    o = jnp.einsum("bhnc,ohcd->bhnd", p, vh)
    o = o.transpose(0, 2, 1, 3).reshape(B, N, E)
    attn = o @ params["wo"] + params["bo"]

    def ln(z, g, b):
        mu = jnp.mean(z, axis=-1, keepdims=True)
        var = jnp.mean((z - mu) ** 2, axis=-1, keepdims=True)
        return (z - mu) * jax.lax.rsqrt(var + 1e-5) * g + b

    h1 = ln(x + attn, params["g1"], params["be1"])
    m = jnp.maximum(h1 @ params["w1"] + params["b1"], 0.0)
    m = m @ params["w2"] + params["b2"]
    y = ln(h1 + m, params["gm"], params["bm"])
    return jnp.squeeze(y), cc


if __name__ == "__main__":
    # small shapes consistent with the module
    B, N = 2, 8          # batch, number of bbox tokens
    E = 32               # embedding_dim
    H = 4                # num_heads
    M = 64               # mlp_dim
    C = 21               # num_clusters

    key = jax.random.PRNGKey(0)
    ks = jax.random.split(key, 12)

    def lin(k, fan_in, fan_out):
        # deterministic small-scale init (weight stored pre-transposed: (in, out))
        kw, kb = jax.random.split(k)
        w = jax.random.normal(kw, (fan_in, fan_out), jnp.float32) * (1.0 / math.sqrt(fan_in))
        b = jax.random.normal(kb, (1, fan_out), jnp.float32) * 0.01
        return w, b

    params = {}
    params["cc"] = jax.random.normal(ks[0], (C, E), jnp.float32) / math.sqrt(E / 2)
    params["wq"], params["bq"] = lin(ks[1], E, E)
    params["wk"], params["bk"] = lin(ks[2], E, E)
    params["wv"], params["bv"] = lin(ks[3], E, E)
    params["wo"], params["bo"] = lin(ks[4], E, E)
    params["g1"] = jnp.ones((1, E), jnp.float32)
    params["be1"] = jnp.zeros((1, E), jnp.float32)
    params["w1"], params["b1"] = lin(ks[5], E, M)
    params["w2"], params["b2"] = lin(ks[6], M, E)
    params["gm"] = jnp.ones((1, E), jnp.float32)
    params["bm"] = jnp.zeros((1, E), jnp.float32)

    bbox_features = jax.random.normal(ks[7], (B, N, E), jnp.float32)

    # one-time parameter preparation (not on the per-forward path)
    prepared = prepare_kmean_attention_params(params, num_heads=H)
    prepared = jax.tree_util.tree_map(jax.block_until_ready, prepared)

    out, centers = kmean_attention_block(bbox_features, prepared)
    out = jax.block_until_ready(out)
    centers = jax.block_until_ready(centers)

    ref_out, ref_centers = _reference(bbox_features, params, num_heads=H)
    assert out.shape == ref_out.shape
    assert jnp.allclose(out, ref_out, atol=1e-4, rtol=1e-4)
    assert jnp.allclose(centers, ref_centers)

    print("KERNEL_OK")
</pallas_src>

<mosaic_0001>
module attributes {stable_mosaic.version = 11 : i64} {
  func.func @_kmean_attn_kernel(%arg0: i32, %arg1: memref<16x32xf32, #tpu.memory_space<vmem>>, %arg2: memref<32x32xf32, #tpu.memory_space<vmem>>, %arg3: memref<1x32xf32, #tpu.memory_space<vmem>>, %arg4: memref<32x84xf32, #tpu.memory_space<vmem>>, %arg5: memref<84x64xf32, #tpu.memory_space<vmem>>, %arg6: memref<32x32xf32, #tpu.memory_space<vmem>>, %arg7: memref<1x32xf32, #tpu.memory_space<vmem>>, %arg8: memref<1x32xf32, #tpu.memory_space<vmem>>, %arg9: memref<1x32xf32, #tpu.memory_space<vmem>>, %arg10: memref<32x64xf32, #tpu.memory_space<vmem>>, %arg11: memref<1x64xf32, #tpu.memory_space<vmem>>, %arg12: memref<64x32xf32, #tpu.memory_space<vmem>>, %arg13: memref<1x32xf32, #tpu.memory_space<vmem>>, %arg14: memref<1x32xf32, #tpu.memory_space<vmem>>, %arg15: memref<1x32xf32, #tpu.memory_space<vmem>>, %arg16: memref<16x32xf32, #tpu.memory_space<vmem>>) attributes {dimension_semantics = [#tpu.dimension_semantics<parallel>], iteration_bounds = array<i64: 1>, scalar_prefetch = 0 : i64, scratch_operands = 0 : i64, tpu.core_type = #tpu.core_type<tc>, window_params = [{transform_indices = @transform_0, window_bounds = array<i64: 16, 32>}, {pipeline_mode = #tpu.pipeline_mode<synchronous>, transform_indices = @transform_1, window_bounds = array<i64: 32, 32>}, {pipeline_mode = #tpu.pipeline_mode<synchronous>, transform_indices = @transform_2, window_bounds = array<i64: 1, 32>}, {pipeline_mode = #tpu.pipeline_mode<synchronous>, transform_indices = @transform_3, window_bounds = array<i64: 32, 84>}, {pipeline_mode = #tpu.pipeline_mode<synchronous>, transform_indices = @transform_4, window_bounds = array<i64: 84, 64>}, {pipeline_mode = #tpu.pipeline_mode<synchronous>, transform_indices = @transform_5, window_bounds = array<i64: 32, 32>}, {pipeline_mode = #tpu.pipeline_mode<synchronous>, transform_indices = @transform_6, window_bounds = array<i64: 1, 32>}, {pipeline_mode = #tpu.pipeline_mode<synchronous>, transform_indices = @transform_7, window_bounds = array<i64: 1, 32>}, {pipeline_mode = #tpu.pipeline_mode<synchronous>, transform_indices = @transform_8, window_bounds = array<i64: 1, 32>}, {pipeline_mode = #tpu.pipeline_mode<synchronous>, transform_indices = @transform_9, window_bounds = array<i64: 32, 64>}, {pipeline_mode = #tpu.pipeline_mode<synchronous>, transform_indices = @transform_10, window_bounds = array<i64: 1, 64>}, {pipeline_mode = #tpu.pipeline_mode<synchronous>, transform_indices = @transform_11, window_bounds = array<i64: 64, 32>}, {pipeline_mode = #tpu.pipeline_mode<synchronous>, transform_indices = @transform_12, window_bounds = array<i64: 1, 32>}, {pipeline_mode = #tpu.pipeline_mode<synchronous>, transform_indices = @transform_13, window_bounds = array<i64: 1, 32>}, {pipeline_mode = #tpu.pipeline_mode<synchronous>, transform_indices = @transform_14, window_bounds = array<i64: 1, 32>}, {transform_indices = @transform_15, window_bounds = array<i64: 16, 32>}]} {
    %c0 = arith.constant 0 : index
    %c0_0 = arith.constant 0 : index
    %0 = vector.load %arg1[%c0, %c0_0] : memref<16x32xf32, #tpu.memory_space<vmem>>, vector<16x32xf32>
    %c0_1 = arith.constant 0 : index
    %c0_2 = arith.constant 0 : index
    %1 = vector.load %arg2[%c0_1, %c0_2] : memref<32x32xf32, #tpu.memory_space<vmem>>, vector<32x32xf32>
    %cst = arith.constant dense<0.000000e+00> : vector<16x32xf32>
    %2 = tpu.matmul %0, %1, %cst {dimension_numbers = #tpu.dot_dimension_numbers<[1], [0], [0], [1], [0, 0, 1, 1], [], []>} : vector<16x32xf32>, vector<32x32xf32>, vector<16x32xf32> -> vector<16x32xf32>
    %c0_3 = arith.constant 0 : index
    %c0_4 = arith.constant 0 : index
    %3 = vector.load %arg3[%c0_3, %c0_4] : memref<1x32xf32, #tpu.memory_space<vmem>>, vector<1x32xf32>
    %4 = vector.broadcast %3 : vector<1x32xf32> to vector<16x32xf32>
    %5 = arith.addf %2, %4 : vector<16x32xf32>
    %c0_5 = arith.constant 0 : index
    %c0_6 = arith.constant 0 : index
    %6 = vector.load %arg4[%c0_5, %c0_6] : memref<32x84xf32, #tpu.memory_space<vmem>>, vector<32x84xf32>
    %cst_7 = arith.constant dense<0.000000e+00> : vector<16x84xf32>
    %7 = tpu.matmul %5, %6, %cst_7 {dimension_numbers = #tpu.dot_dimension_numbers<[1], [0], [0], [1], [0, 0, 1, 1], [], []>} : vector<16x32xf32>, vector<32x84xf32>, vector<16x84xf32> -> vector<16x84xf32>
    %cst_8 = arith.constant dense<0xFF800000> : vector<16xf32>
    %8 = vector.multi_reduction <maximumf>, %7, %cst_8 [1] : vector<16x84xf32> to vector<16xf32>
    %9 = vector.shape_cast %8 : vector<16xf32> to vector<16x1xf32>
    %10 = vector.broadcast %9 : vector<16x1xf32> to vector<16x84xf32>
    %11 = arith.subf %7, %10 : vector<16x84xf32>
    %12 = math.exp %11 : vector<16x84xf32>
    %c0_9 = arith.constant 0 : index
    %c0_10 = arith.constant 0 : index
    %13 = vector.load %arg5[%c0_9, %c0_10] : memref<84x64xf32, #tpu.memory_space<vmem>>, vector<84x64xf32>
    %cst_11 = arith.constant dense<0.000000e+00> : vector<16x64xf32>
    %14 = tpu.matmul %12, %13, %cst_11 {dimension_numbers = #tpu.dot_dimension_numbers<[1], [0], [0], [1], [0, 0, 1, 1], [], []>} : vector<16x84xf32>, vector<84x64xf32>, vector<16x64xf32> -> vector<16x64xf32>
    %15 = vector.extract_strided_slice %14 {offsets = [0, 0], sizes = [16, 32], strides = [1, 1]} : vector<16x64xf32> to vector<16x32xf32>
    %16 = vector.extract_strided_slice %14 {offsets = [0, 32], sizes = [16, 32], strides = [1, 1]} : vector<16x64xf32> to vector<16x32xf32>
    %17 = arith.divf %15, %16 : vector<16x32xf32>
    %c0_12 = arith.constant 0 : index
    %c0_13 = arith.constant 0 : index
    %18 = vector.load %arg6[%c0_12, %c0_13] : memref<32x32xf32, #tpu.memory_space<vmem>>, vector<32x32xf32>
    %cst_14 = arith.constant dense<0.000000e+00> : vector<16x32xf32>
    %19 = tpu.matmul %17, %18, %cst_14 {dimension_numbers = #tpu.dot_dimension_numbers<[1], [0], [0], [1], [0, 0, 1, 1], [], []>} : vector<16x32xf32>, vector<32x32xf32>, vector<16x32xf32> -> vector<16x32xf32>
    %c0_15 = arith.constant 0 : index
    %c0_16 = arith.constant 0 : index
    %20 = vector.load %arg7[%c0_15, %c0_16] : memref<1x32xf32, #tpu.memory_space<vmem>>, vector<1x32xf32>
    %21 = vector.broadcast %20 : vector<1x32xf32> to vector<16x32xf32>
    %22 = arith.addf %19, %21 : vector<16x32xf32>
    %23 = arith.addf %0, %22 : vector<16x32xf32>
    %cst_17 = arith.constant dense<0.000000e+00> : vector<16xf32>
    %24 = vector.multi_reduction <add>, %23, %cst_17 [1] : vector<16x32xf32> to vector<16xf32>
    %25 = vector.shape_cast %24 : vector<16xf32> to vector<16x1xf32>
    %cst_18 = arith.constant 3.200000e+01 : f32
    %26 = vector.broadcast %cst_18 : f32 to vector<16x1xf32>
    %27 = arith.divf %25, %26 : vector<16x1xf32>
    %28 = vector.broadcast %27 : vector<16x1xf32> to vector<16x32xf32>
    %29 = arith.subf %23, %28 : vector<16x32xf32>
    %30 = arith.mulf %29, %29 : vector<16x32xf32>
    %cst_19 = arith.constant dense<0.000000e+00> : vector<16xf32>
    %31 = vector.multi_reduction <add>, %30, %cst_19 [1] : vector<16x32xf32> to vector<16xf32>
    %32 = vector.shape_cast %31 : vector<16xf32> to vector<16x1xf32>
    %cst_20 = arith.constant 3.200000e+01 : f32
    %33 = vector.broadcast %cst_20 : f32 to vector<16x1xf32>
    %34 = arith.divf %32, %33 : vector<16x1xf32>
    %35 = vector.broadcast %27 : vector<16x1xf32> to vector<16x32xf32>
    %36 = arith.subf %23, %35 : vector<16x32xf32>
    %cst_21 = arith.constant 9.99999974E-6 : f32
    %37 = vector.broadcast %cst_21 : f32 to vector<16x1xf32>
    %38 = arith.addf %34, %37 : vector<16x1xf32>
    %39 = math.rsqrt %38 : vector<16x1xf32>
    %40 = vector.broadcast %39 : vector<16x1xf32> to vector<16x32xf32>
    %41 = arith.mulf %36, %40 : vector<16x32xf32>
    %c0_22 = arith.constant 0 : index
    %c0_23 = arith.constant 0 : index
    %42 = vector.load %arg8[%c0_22, %c0_23] : memref<1x32xf32, #tpu.memory_space<vmem>>, vector<1x32xf32>
    %43 = vector.broadcast %42 : vector<1x32xf32> to vector<16x32xf32>
    %44 = arith.mulf %41, %43 : vector<16x32xf32>
    %c0_24 = arith.constant 0 : index
    %c0_25 = arith.constant 0 : index
    %45 = vector.load %arg9[%c0_24, %c0_25] : memref<1x32xf32, #tpu.memory_space<vmem>>, vector<1x32xf32>
    %46 = vector.broadcast %45 : vector<1x32xf32> to vector<16x32xf32>
    %47 = arith.addf %44, %46 : vector<16x32xf32>
    %c0_26 = arith.constant 0 : index
    %c0_27 = arith.constant 0 : index
    %48 = vector.load %arg10[%c0_26, %c0_27] : memref<32x64xf32, #tpu.memory_space<vmem>>, vector<32x64xf32>
    %cst_28 = arith.constant dense<0.000000e+00> : vector<16x64xf32>
    %49 = tpu.matmul %47, %48, %cst_28 {dimension_numbers = #tpu.dot_dimension_numbers<[1], [0], [0], [1], [0, 0, 1, 1], [], []>} : vector<16x32xf32>, vector<32x64xf32>, vector<16x64xf32> -> vector<16x64xf32>
    %c0_29 = arith.constant 0 : index
    %c0_30 = arith.constant 0 : index
    %50 = vector.load %arg11[%c0_29, %c0_30] : memref<1x64xf32, #tpu.memory_space<vmem>>, vector<1x64xf32>
    %51 = vector.broadcast %50 : vector<1x64xf32> to vector<16x64xf32>
    %52 = arith.addf %49, %51 : vector<16x64xf32>
    %cst_31 = arith.constant 0.000000e+00 : f32
    %53 = vector.broadcast %cst_31 : f32 to vector<16x64xf32>
    %54 = arith.maximumf %52, %53 : vector<16x64xf32>
    %c0_32 = arith.constant 0 : index
    %c0_33 = arith.constant 0 : index
    %55 = vector.load %arg12[%c0_32, %c0_33] : memref<64x32xf32, #tpu.memory_space<vmem>>, vector<64x32xf32>
    %cst_34 = arith.constant dense<0.000000e+00> : vector<16x32xf32>
    %56 = tpu.matmul %54, %55, %cst_34 {dimension_numbers = #tpu.dot_dimension_numbers<[1], [0], [0], [1], [0, 0, 1, 1], [], []>} : vector<16x64xf32>, vector<64x32xf32>, vector<16x32xf32> -> vector<16x32xf32>
    %c0_35 = arith.constant 0 : index
    %c0_36 = arith.constant 0 : index
    %57 = vector.load %arg13[%c0_35, %c0_36] : memref<1x32xf32, #tpu.memory_space<vmem>>, vector<1x32xf32>
    %58 = vector.broadcast %57 : vector<1x32xf32> to vector<16x32xf32>
    %59 = arith.addf %56, %58 : vector<16x32xf32>
    %60 = arith.addf %47, %59 : vector<16x32xf32>
    %cst_37 = arith.constant dense<0.000000e+00> : vector<16xf32>
    %61 = vector.multi_reduction <add>, %60, %cst_37 [1] : vector<16x32xf32> to vector<16xf32>
    %62 = vector.shape_cast %61 : vector<16xf32> to vector<16x1xf32>
    %cst_38 = arith.constant 3.200000e+01 : f32
    %63 = vector.broadcast %cst_38 : f32 to vector<16x1xf32>
    %64 = arith.divf %62, %63 : vector<16x1xf32>
    %65 = vector.broadcast %64 : vector<16x1xf32> to vector<16x32xf32>
    %66 = arith.subf %60, %65 : vector<16x32xf32>
    %67 = arith.mulf %66, %66 : vector<16x32xf32>
    %cst_39 = arith.constant dense<0.000000e+00> : vector<16xf32>
    %68 = vector.multi_reduction <add>, %67, %cst_39 [1] : vector<16x32xf32> to vector<16xf32>
    %69 = vector.shape_cast %68 : vector<16xf32> to vector<16x1xf32>
    %cst_40 = arith.constant 3.200000e+01 : f32
    %70 = vector.broadcast %cst_40 : f32 to vector<16x1xf32>
    %71 = arith.divf %69, %70 : vector<16x1xf32>
    %72 = vector.broadcast %64 : vector<16x1xf32> to vector<16x32xf32>
    %73 = arith.subf %60, %72 : vector<16x32xf32>
    %cst_41 = arith.constant 9.99999974E-6 : f32
    %74 = vector.broadcast %cst_41 : f32 to vector<16x1xf32>
    %75 = arith.addf %71, %74 : vector<16x1xf32>
    %76 = math.rsqrt %75 : vector<16x1xf32>
    %77 = vector.broadcast %76 : vector<16x1xf32> to vector<16x32xf32>
    %78 = arith.mulf %73, %77 : vector<16x32xf32>
    %c0_42 = arith.constant 0 : index
    %c0_43 = arith.constant 0 : index
    %79 = vector.load %arg14[%c0_42, %c0_43] : memref<1x32xf32, #tpu.memory_space<vmem>>, vector<1x32xf32>
    %80 = vector.broadcast %79 : vector<1x32xf32> to vector<16x32xf32>
    %81 = arith.mulf %78, %80 : vector<16x32xf32>
    %c0_44 = arith.constant 0 : index
    %c0_45 = arith.constant 0 : index
    %82 = vector.load %arg15[%c0_44, %c0_45] : memref<1x32xf32, #tpu.memory_space<vmem>>, vector<1x32xf32>
    %83 = vector.broadcast %82 : vector<1x32xf32> to vector<16x32xf32>
    %84 = arith.addf %81, %83 : vector<16x32xf32>
    %c0_46 = arith.constant 0 : index
    %c0_47 = arith.constant 0 : index
    %85 = vector.load %arg16[%c0_46, %c0_47] : memref<16x32xf32, #tpu.memory_space<vmem>>, vector<16x32xf32>
    tpu.vector_store %arg16[%c0_46, %c0_47], %84 {strides = array<i32>} : memref<16x32xf32, #tpu.memory_space<vmem>>, vector<16x32xf32>,
    return
  }
  func.func @transform_0(%arg0: i32) -> (i32, i32) {
    %c0_i32 = arith.constant 0 : i32
    %c0_i32_0 = arith.constant 0 : i32
    return %arg0, %c0_i32 : i32, i32
  }
  func.func @transform_1(%arg0: i32) -> (i32, i32) {
    %c0_i32 = arith.constant 0 : i32
    %c0_i32_0 = arith.constant 0 : i32
    %c0_i32_1 = arith.constant 0 : i32
    return %c0_i32, %c0_i32_0 : i32, i32
  }
  func.func @transform_2(%arg0: i32) -> (i32, i32) {
    %c0_i32 = arith.constant 0 : i32
    %c0_i32_0 = arith.constant 0 : i32
    %c0_i32_1 = arith.constant 0 : i32
    return %c0_i32, %c0_i32_0 : i32, i32
  }
  func.func @transform_3(%arg0: i32) -> (i32, i32) {
    %c0_i32 = arith.constant 0 : i32
    %c0_i32_0 = arith.constant 0 : i32
    %c0_i32_1 = arith.constant 0 : i32
    return %c0_i32, %c0_i32_0 : i32, i32
  }
  func.func @transform_4(%arg0: i32) -> (i32, i32) {
    %c0_i32 = arith.constant 0 : i32
    %c0_i32_0 = arith.constant 0 : i32
    %c0_i32_1 = arith.constant 0 : i32
    return %c0_i32, %c0_i32_0 : i32, i32
  }
  func.func @transform_5(%arg0: i32) -> (i32, i32) {
    %c0_i32 = arith.constant 0 : i32
    %c0_i32_0 = arith.constant 0 : i32
    %c0_i32_1 = arith.constant 0 : i32
    return %c0_i32, %c0_i32_0 : i32, i32
  }
  func.func @transform_6(%arg0: i32) -> (i32, i32) {
    %c0_i32 = arith.constant 0 : i32
    %c0_i32_0 = arith.constant 0 : i32
    %c0_i32_1 = arith.constant 0 : i32
    return %c0_i32, %c0_i32_0 : i32, i32
  }
  func.func @transform_7(%arg0: i32) -> (i32, i32) {
    %c0_i32 = arith.constant 0 : i32
    %c0_i32_0 = arith.constant 0 : i32
    %c0_i32_1 = arith.constant 0 : i32
    return %c0_i32, %c0_i32_0 : i32, i32
  }
  func.func @transform_8(%arg0: i32) -> (i32, i32) {
    %c0_i32 = arith.constant 0 : i32
    %c0_i32_0 = arith.constant 0 : i32
    %c0_i32_1 = arith.constant 0 : i32
    return %c0_i32, %c0_i32_0 : i32, i32
  }
  func.func @transform_9(%arg0: i32) -> (i32, i32) {
    %c0_i32 = arith.constant 0 : i32
    %c0_i32_0 = arith.constant 0 : i32
    %c0_i32_1 = arith.constant 0 : i32
    return %c0_i32, %c0_i32_0 : i32, i32
  }
  func.func @transform_10(%arg0: i32) -> (i32, i32) {
    %c0_i32 = arith.constant 0 : i32
    %c0_i32_0 = arith.constant 0 : i32
    %c0_i32_1 = arith.constant 0 : i32
    return %c0_i32, %c0_i32_0 : i32, i32
  }
  func.func @transform_11(%arg0: i32) -> (i32, i32) {
    %c0_i32 = arith.constant 0 : i32
    %c0_i32_0 = arith.constant 0 : i32
    %c0_i32_1 = arith.constant 0 : i32
    return %c0_i32, %c0_i32_0 : i32, i32
  }
  func.func @transform_12(%arg0: i32) -> (i32, i32) {
    %c0_i32 = arith.constant 0 : i32
    %c0_i32_0 = arith.constant 0 : i32
    %c0_i32_1 = arith.constant 0 : i32
    return %c0_i32, %c0_i32_0 : i32, i32
  }
  func.func @transform_13(%arg0: i32) -> (i32, i32) {
    %c0_i32 = arith.constant 0 : i32
    %c0_i32_0 = arith.constant 0 : i32
    %c0_i32_1 = arith.constant 0 : i32
    return %c0_i32, %c0_i32_0 : i32, i32
  }
  func.func @transform_14(%arg0: i32) -> (i32, i32) {
    %c0_i32 = arith.constant 0 : i32
    %c0_i32_0 = arith.constant 0 : i32
    %c0_i32_1 = arith.constant 0 : i32
    return %c0_i32, %c0_i32_0 : i32, i32
  }
  func.func @transform_15(%arg0: i32) -> (i32, i32) {
    %c0_i32 = arith.constant 0 : i32
    %c0_i32_0 = arith.constant 0 : i32
    return %arg0, %c0_i32 : i32, i32
  }
}

</mosaic_0001>

<llo_original>
// kernel: tpu_custom_call.1
$region0: #{tpu_custom_call.1}
  #allocation0 [shape = 'u32[]', space=smem, size = 0x4, offset = 0x4, fixed_abs, tag = 'smem constant byte address 0x4 - core index']
  #allocation1 [shape = 'u32[144,128]{1,0:T(1,128)}', space=vmem, size = 0x12000, scoped, tag = 'internal scratch']
  %s0 = inlined_call_operand.vmem [shape: f32[16,32], index: 0, kind: input, shape index: {}]
  %s1 = inlined_call_operand.vmem [shape: f32[32,32], index: 1, kind: input, shape index: {}]
  %s2 = inlined_call_operand.vmem [shape: f32[1,32], index: 2, kind: input, shape index: {}]
  %s3 = inlined_call_operand.vmem [shape: f32[32,84], index: 3, kind: input, shape index: {}]
  %s4 = inlined_call_operand.vmem [shape: f32[84,64], index: 4, kind: input, shape index: {}]
  %s5 = inlined_call_operand.vmem [shape: f32[32,32], index: 5, kind: input, shape index: {}]
  %s6 = inlined_call_operand.vmem [shape: f32[1,32], index: 6, kind: input, shape index: {}]
  %s7 = inlined_call_operand.vmem [shape: f32[1,32], index: 7, kind: input, shape index: {}]
  %s8 = inlined_call_operand.vmem [shape: f32[1,32], index: 8, kind: input, shape index: {}]
  %s9 = inlined_call_operand.vmem [shape: f32[32,64], index: 9, kind: input, shape index: {}]
  %s10 = inlined_call_operand.vmem [shape: f32[1,64], index: 10, kind: input, shape index: {}]
  %s11 = inlined_call_operand.vmem [shape: f32[64,32], index: 11, kind: input, shape index: {}]
  %s12 = inlined_call_operand.vmem [shape: f32[1,32], index: 12, kind: input, shape index: {}]
  %s13 = inlined_call_operand.vmem [shape: f32[1,32], index: 13, kind: input, shape index: {}]
  %s14 = inlined_call_operand.vmem [shape: f32[1,32], index: 14, kind: input, shape index: {}]
  %s15 = inlined_call_operand.hbm [shape: f32[16,32], index: 15, kind: output, shape index: {}]
  %s16 = sld [smem:[#allocation0]]
  $region70: #{tpu_custom_call.1} parent=0
    _
  %s18 = ssub.s32 1, %s16
  %s19 = scalar_select 0, %s18, %s16
  $region1: #{tpu_custom_call.1} parent=0
    #allocation2 [shape = 'u8[8192]{0}', space=vmem, size = 0x2000, scoped, tag = 'output window, operand 0, single buffered']
    #allocation3 [shape = 's32[1]{0}', space=sflag, size = 0x4, scoped, tag = 'scoped memory for tpu_custom_call.1']
    %20 = vsyncpa [#allocation3], 0
    // Predicated region
    $region2: #{tpu_custom_call.1} parent=1 // pred_check
      _
    $region3: #{tpu_custom_call.1} parent=1 // pred_check_branch
      %22 = sbr.rel (0) target = $region5
    $region4: #{tpu_custom_call.1} parent=1 // pred_region
      _
    $region5: #{tpu_custom_call.1} parent=1 // pred_fallthru
      _
    // Predicated region
    $region6: #{tpu_custom_call.1} parent=1 // pred_check
      _
    $region7: #{tpu_custom_call.1} parent=1 // pred_check_branch
      %24 = sbr.rel (0) target = $region9
    $region8: #{tpu_custom_call.1} parent=1 // pred_region
      _
    $region9: #{tpu_custom_call.1} parent=1 // pred_fallthru
      _
    // Predicated region
    $region10: #{tpu_custom_call.1} parent=1 // pred_check
      _
    $region11: #{tpu_custom_call.1} parent=1 // pred_check_branch
      %26 = sbr.rel (0) target = $region13
    $region12: #{tpu_custom_call.1} parent=1 // pred_region
      _
    $region13: #{tpu_custom_call.1} parent=1 // pred_fallthru
      _
    // Predicated region
    $region14: #{tpu_custom_call.1} parent=1 // pred_check
      _
    $region15: #{tpu_custom_call.1} parent=1 // pred_check_branch
      %28 = sbr.rel (0) target = $region17
    $region16: #{tpu_custom_call.1} parent=1 // pred_region
      _
    $region17: #{tpu_custom_call.1} parent=1 // pred_fallthru
      _
    // Predicated region
    $region18: #{tpu_custom_call.1} parent=1 // pred_check
      _
    $region19: #{tpu_custom_call.1} parent=1 // pred_check_branch
      %30 = sbr.rel (0) target = $region21
    $region20: #{tpu_custom_call.1} parent=1 // pred_region
      _
    $region21: #{tpu_custom_call.1} parent=1 // pred_fallthru
      _
    // Predicated region
    $region22: #{tpu_custom_call.1} parent=1 // pred_check
      _
    $region23: #{tpu_custom_call.1} parent=1 // pred_check_branch
      %32 = sbr.rel (0) target = $region25
    $region24: #{tpu_custom_call.1} parent=1 // pred_region
      _
    $region25: #{tpu_custom_call.1} parent=1 // pred_fallthru
      _
    // Predicated region
    $region26: #{tpu_custom_call.1} parent=1 // pred_check
      _
    $region27: #{tpu_custom_call.1} parent=1 // pred_check_branch
      %34 = sbr.rel (0) target = $region29
    $region28: #{tpu_custom_call.1} parent=1 // pred_region
      _
    $region29: #{tpu_custom_call.1} parent=1 // pred_fallthru
      _
    // Predicated region
    $region30: #{tpu_custom_call.1} parent=1 // pred_check
      _
    $region31: #{tpu_custom_call.1} parent=1 // pred_check_branch
      %36 = sbr.rel (0) target = $region33
    $region32: #{tpu_custom_call.1} parent=1 // pred_region
      _
    $region33: #{tpu_custom_call.1} parent=1 // pred_fallthru
      _
    // Predicated region
    $region34: #{tpu_custom_call.1} parent=1 // pred_check
      _
    $region35: #{tpu_custom_call.1} parent=1 // pred_check_branch
      %38 = sbr.rel (0) target = $region37
    $region36: #{tpu_custom_call.1} parent=1 // pred_region
      _
    $region37: #{tpu_custom_call.1} parent=1 // pred_fallthru
      _
    // Predicated region
    $region38: #{tpu_custom_call.1} parent=1 // pred_check
      _
    $region39: #{tpu_custom_call.1} parent=1 // pred_check_branch
      %40 = sbr.rel (0) target = $region41
    $region40: #{tpu_custom_call.1} parent=1 // pred_region
      _
    $region41: #{tpu_custom_call.1} parent=1 // pred_fallthru
      _
    // Predicated region
    $region42: #{tpu_custom_call.1} parent=1 // pred_check
      _
    $region43: #{tpu_custom_call.1} parent=1 // pred_check_branch
      %42 = sbr.rel (0) target = $region45
    $region44: #{tpu_custom_call.1} parent=1 // pred_region
      _
    $region45: #{tpu_custom_call.1} parent=1 // pred_fallthru
      _
    // Predicated region
    $region46: #{tpu_custom_call.1} parent=1 // pred_check
      _
    $region47: #{tpu_custom_call.1} parent=1 // pred_check_branch
      %44 = sbr.rel (0) target = $region49
    $region48: #{tpu_custom_call.1} parent=1 // pred_region
      _
    $region49: #{tpu_custom_call.1} parent=1 // pred_fallthru
      _
    // Predicated region
    $region50: #{tpu_custom_call.1} parent=1 // pred_check
      _
    $region51: #{tpu_custom_call.1} parent=1 // pred_check_branch
      %46 = sbr.rel (0) target = $region53
    $region52: #{tpu_custom_call.1} parent=1 // pred_region
      _
    $region53: #{tpu_custom_call.1} parent=1 // pred_fallthru
      _
    // Predicated region
    $region54: #{tpu_custom_call.1} parent=1 // pred_check
      _
    $region55: #{tpu_custom_call.1} parent=1 // pred_check_branch
      %48 = sbr.rel (0) target = $region57
    $region56: #{tpu_custom_call.1} parent=1 // pred_region
      _
    $region57: #{tpu_custom_call.1} parent=1 // pred_fallthru
      _
    // Predicated region
    $region58: #{tpu_custom_call.1} parent=1 // pred_check
      _
    $region59: #{tpu_custom_call.1} parent=1 // pred_check_branch
      %50 = sbr.rel (0) target = $region61
    $region60: #{tpu_custom_call.1} parent=1 // pred_region
      _
    $region61: #{tpu_custom_call.1} parent=1 // pred_fallthru
      _
    %v51 = vld [vmem:[%s0] sm:$0xff]
    %v52 = vld [vmem:[%s0 + $0x8] sm:$0xff]
    %v53 = vld [vmem:[%s1] sm:$0xff]
    %v54 = vld [vmem:[%s1 + $0x8] sm:$0xff]
    %v55 = vld [vmem:[%s1 + $0x10] sm:$0xff]
    %v56 = vld [vmem:[%s1 + $0x18] sm:$0xff]
    %v57 = vld [vmem:[%s2] sm:$0x1]
    %v59 = vlaneseq
    %v60 = vshrl.u32 %v59, 7
    %v61 = vsub.s32 0, %v60
    %v62 = vrot.slane %v57, %v61
    %vm64 = vcmask 261120
    %v66 = vsel %vm64, %v51, 0
    %v69 = vsel %vm64, %v52, 0
    %71 = vmatprep.subr.mxu0 0.0
    %72 = vmatpush1.msra.mxu0 %v53
    %73 = vmatprep.subr.mxu0 0.0
    %74 = vmatpush1.msra.mxu0 %v54
    %75 = vmatprep.subr.mxu0 0.0
    %76 = vmatpush1.msra.mxu0 %v55
    %77 = vmatprep.subr.mxu0 0.0
    %78 = vmatpush1.msra.mxu0 %v56
    %79 = vmatprep.subr.mxu0 0.0
    %80 = vmatpush1.msra.mxu0 0.0
    %81 = vmatprep.subr.mxu0 0.0
    %82 = vmatpush1.msra.mxu0 0.0
    %83 = vmatprep.subr.mxu0 0.0
    %84 = vmatpush1.msra.mxu0 0.0
    %85 = vmatprep.subr.mxu0 0.0
    %86 = vmatpush1.msra.mxu0 0.0
    %87 = vmatprep.subr.mxu0 0.0
    %88 = vmatpush1.msra.mxu0 0.0
    %89 = vmatprep.subr.mxu0 0.0
    %90 = vmatpush1.msra.mxu0 0.0
    %91 = vmatprep.subr.mxu0 0.0
    %92 = vmatpush1.msra.mxu0 0.0
    %93 = vmatprep.subr.mxu0 0.0
    %94 = vmatpush1.msra.mxu0 0.0
    %95 = vmatprep.subr.mxu0 0.0
    %96 = vmatpush1.msra.mxu0 0.0
    %97 = vmatprep.subr.mxu0 0.0
    %98 = vmatpush1.msra.mxu0 0.0
    %99 = vmatprep.subr.mxu0 0.0
    %100 = vmatpush1.msra.mxu0 0.0
    %101 = vmatprep.subr.mxu0 0.0
    %102 = vmatpush1.msra.mxu0 0.0
    %103 = vmatprep.subr.mxu0 0.0
    %104 = vmatpush1.msra.mxu0 0.0
    %105 = vmatprep.subr.mxu0 0.0
    %106 = vmatpush1.msra.mxu0 0.0
    %107 = vmatprep.subr.mxu0 0.0
    %108 = vmatpush1.msra.mxu0 0.0
    %109 = vmatprep.subr.mxu0 0.0
    %110 = vmatpush1.msra.mxu0 0.0
    %111 = vmatprep.subr.mxu0 0.0
    %112 = vmatpush1.msra.mxu0 0.0
    %113 = vmatprep.subr.mxu0 0.0
    %114 = vmatpush1.msra.mxu0 0.0
    %115 = vmatprep.subr.mxu0 0.0
    %116 = vmatpush1.msra.mxu0 0.0
    %117 = vmatprep.subr.mxu0 0.0
    %118 = vmatpush1.msra.mxu0 0.0
    %119 = vmatprep.subr.mxu0 0.0
    %120 = vmatpush1.msra.mxu0 0.0
    %121 = vmatprep.subr.mxu0 0.0
    %122 = vmatpush1.msra.mxu0 0.0
    %123 = vmatprep.subr.mxu0 0.0
    %124 = vmatpush1.msra.mxu0 0.0
    %125 = vmatprep.subr.mxu0 0.0
    %126 = vmatpush1.msra.mxu0 0.0
    %127 = vmatprep.subr.mxu0 0.0
    %128 = vmatpush1.msra.mxu0 0.0
    %129 = vmatprep.subr.mxu0 0.0
    %130 = vmatpush1.msra.mxu0 0.0
    %131 = vmatprep.subr.mxu0 0.0
    %132 = vmatpush1.msra.mxu0 0.0
    %133 = vmatprep.subr.mxu0 0.0
    %134 = vmatpush1.msra.mxu0 0.0
    %135 = vmatprep.mubr.f32.mxu0 0.0
    %136 = vmatmul.mubr.f32.gmra.mrb[0].mxu0 %v66
    %v137 = vpop.f32.mrb[0].mxu0
    %v138 = vadd.f32 %v62, %v137
    %v139 = vpop.f32.mrb[0].mxu0
    %140 = vmatprep.mubr.f32.mxu0 0.0
    %141 = vmatmul.mubr.f32.gmra.mrb[0].mxu0 %v69
    %v142 = vpop.f32.mrb[0].mxu0
    %v143 = vadd.f32 %v62, %v142
    %v144 = vpop.f32.mrb[0].mxu0
    %145 = vdwg.mxu0
    %v146 = vld [vmem:[%s3] sm:$0xff]
    %v147 = vld [vmem:[%s3 + $0x8] sm:$0xff]
    %v148 = vld [vmem:[%s3 + $0x10] sm:$0xff]
    %v149 = vld [vmem:[%s3 + $0x18] sm:$0xff]
    %v151 = vsel %vm64, %v138, 0
    %v154 = vsel %vm64, %v143, 0
    %156 = vmatprep.subr.mxu0 0.0
    %157 = vmatpush1.msra.mxu0 %v146
    %158 = vmatprep.subr.mxu0 0.0
    %159 = vmatpush1.msra.mxu0 %v147
    %160 = vmatprep.subr.mxu0 0.0
    %161 = vmatpush1.msra.mxu0 %v148
    %162 = vmatprep.subr.mxu0 0.0
    %163 = vmatpush1.msra.mxu0 %v149
    %164 = vmatprep.subr.mxu0 0.0
    %165 = vmatpush1.msra.mxu0 0.0
    %166 = vmatprep.subr.mxu0 0.0
    %167 = vmatpush1.msra.mxu0 0.0
    %168 = vmatprep.subr.mxu0 0.0
    %169 = vmatpush1.msra.mxu0 0.0
    %170 = vmatprep.subr.mxu0 0.0
    %171 = vmatpush1.msra.mxu0 0.0
    %172 = vmatprep.subr.mxu0 0.0
    %173 = vmatpush1.msra.mxu0 0.0
    %174 = vmatprep.subr.mxu0 0.0
    %175 = vmatpush1.msra.mxu0 0.0
    %176 = vmatprep.subr.mxu0 0.0
    %177 = vmatpush1.msra.mxu0 0.0
    %178 = vmatprep.subr.mxu0 0.0
    %179 = vmatpush1.msra.mxu0 0.0
    %180 = vmatprep.subr.mxu0 0.0
    %181 = vmatpush1.msra.mxu0 0.0
    %182 = vmatprep.subr.mxu0 0.0
    %183 = vmatpush1.msra.mxu0 0.0
    %184 = vmatprep.subr.mxu0 0.0
    %185 = vmatpush1.msra.mxu0 0.0
    %186 = vmatprep.subr.mxu0 0.0
    %187 = vmatpush1.msra.mxu0 0.0
    %188 = vmatprep.subr.mxu0 0.0
    %189 = vmatpush1.msra.mxu0 0.0
    %190 = vmatprep.subr.mxu0 0.0
    %191 = vmatpush1.msra.mxu0 0.0
    %192 = vmatprep.subr.mxu0 0.0
    %193 = vmatpush1.msra.mxu0 0.0
    %194 = vmatprep.subr.mxu0 0.0
    %195 = vmatpush1.msra.mxu0 0.0
    %196 = vmatprep.subr.mxu0 0.0
    %197 = vmatpush1.msra.mxu0 0.0
    %198 = vmatprep.subr.mxu0 0.0
    %199 = vmatpush1.msra.mxu0 0.0
    %200 = vmatprep.subr.mxu0 0.0
    %201 = vmatpush1.msra.mxu0 0.0
    %202 = vmatprep.subr.mxu0 0.0
    %203 = vmatpush1.msra.mxu0 0.0
    %204 = vmatprep.subr.mxu0 0.0
    %205 = vmatpush1.msra.mxu0 0.0
    %206 = vmatprep.subr.mxu0 0.0
    %207 = vmatpush1.msra.mxu0 0.0
    %208 = vmatprep.subr.mxu0 0.0
    %209 = vmatpush1.msra.mxu0 0.0
    %210 = vmatprep.subr.mxu0 0.0
    %211 = vmatpush1.msra.mxu0 0.0
    %212 = vmatprep.subr.mxu0 0.0
    %213 = vmatpush1.msra.mxu0 0.0
    %214 = vmatprep.subr.mxu0 0.0
    %215 = vmatpush1.msra.mxu0 0.0
    %216 = vmatprep.subr.mxu0 0.0
    %217 = vmatpush1.msra.mxu0 0.0
    %218 = vmatprep.subr.mxu0 0.0
    %219 = vmatpush1.msra.mxu0 0.0
    %220 = vmatprep.mubr.f32.mxu0 0.0
    %221 = vmatmul.mubr.f32.gmra.mrb[0].mxu0 %v151
    %v222 = vpop.f32.mrb[0].mxu0
    %v223 = vadd.f32 0.0, %v222
    %v224 = vpop.f32.mrb[0].mxu0
    %225 = vmatprep.mubr.f32.mxu0 0.0
    %226 = vmatmul.mubr.f32.gmra.mrb[0].mxu0 %v154
    %v227 = vpop.f32.mrb[0].mxu0
    %v228 = vadd.f32 0.0, %v227
    %v229 = vpop.f32.mrb[0].mxu0
    %230 = vdwg.mxu0
    %vm231 = vcmask 687104
    %v232 = vsel %vm231, %v223, -inf
    %233 = vmax.xlane.f32.xlu0 %v232
    %v234 = vpop.xlane.xlu0 %233
    %v235 = vsel %vm231, %v228, -inf
    %236 = vmax.xlane.f32.xlu0 %v235
    %v237 = vpop.xlane.xlu0 %236
    %v238 = vsub.f32 %v223, %v234
    %v239 = vsub.f32 %v228, %v237
    %v240 = vmul.f32 %v238, 1.442695
    %v241 = vpow.pop %v240
    %v242 = vmul.f32 %v239, 1.442695
    %v243 = vpow.pop %v242
    %v244 = vld [vmem:[%s4] sm:$0xff]
    %v245 = vld [vmem:[%s4 + $0x8] sm:$0xff]
    %v246 = vld [vmem:[%s4 + $0x10] sm:$0xff]
    %v247 = vld [vmem:[%s4 + $0x18] sm:$0xff]
    %v248 = vld [vmem:[%s4 + $0x20] sm:$0xff]
    %v249 = vld [vmem:[%s4 + $0x28] sm:$0xff]
    %v250 = vld [vmem:[%s4 + $0x30] sm:$0xff]
    %v251 = vld [vmem:[%s4 + $0x38] sm:$0xff]
    %v252 = vld [vmem:[%s4 + $0x40] sm:$0xff]
    %v253 = vld [vmem:[%s4 + $0x48] sm:$0xff]
    %v254 = vld [vmem:[%s4 + $0x50] sm:$0xf]
    %v256 = vsel %vm231, %v241, 0
    %v259 = vsel %vm231, %v243, 0
    %vm261 = vcmask 1043456
    %v263 = vsel %vm261, %v254, 0
    %265 = vmatprep.subr.mxu0 0.0
    %266 = vmatpush1.msra.mxu0 %v244
    %267 = vmatprep.subr.mxu0 0.0
    %268 = vmatpush1.msra.mxu0 %v245
    %269 = vmatprep.subr.mxu0 0.0
    %270 = vmatpush1.msra.mxu0 %v246
    %271 = vmatprep.subr.mxu0 0.0
    %272 = vmatpush1.msra.mxu0 %v247
    %273 = vmatprep.subr.mxu0 0.0
    %274 = vmatpush1.msra.mxu0 %v248
    %275 = vmatprep.subr.mxu0 0.0
    %276 = vmatpush1.msra.mxu0 %v249
    %277 = vmatprep.subr.mxu0 0.0
    %278 = vmatpush1.msra.mxu0 %v250
    %279 = vmatprep.subr.mxu0 0.0
    %280 = vmatpush1.msra.mxu0 %v251
    %281 = vmatprep.subr.mxu0 0.0
    %282 = vmatpush1.msra.mxu0 %v252
    %283 = vmatprep.subr.mxu0 0.0
    %284 = vmatpush1.msra.mxu0 %v253
    %285 = vmatprep.subr.mxu0 0.0
    %286 = vmatpush1.msra.mxu0 %v263
    %287 = vmatprep.subr.mxu0 0.0
    %288 = vmatpush1.msra.mxu0 0.0
    %289 = vmatprep.subr.mxu0 0.0
    %290 = vmatpush1.msra.mxu0 0.0
    %291 = vmatprep.subr.mxu0 0.0
    %292 = vmatpush1.msra.mxu0 0.0
    %293 = vmatprep.subr.mxu0 0.0
    %294 = vmatpush1.msra.mxu0 0.0
    %295 = vmatprep.subr.mxu0 0.0
    %296 = vmatpush1.msra.mxu0 0.0
    %297 = vmatprep.subr.mxu0 0.0
    %298 = vmatpush1.msra.mxu0 0.0
    %299 = vmatprep.subr.mxu0 0.0
    %300 = vmatpush1.msra.mxu0 0.0
    %301 = vmatprep.subr.mxu0 0.0
    %302 = vmatpush1.msra.mxu0 0.0
    %303 = vmatprep.subr.mxu0 0.0
    %304 = vmatpush1.msra.mxu0 0.0
    %305 = vmatprep.subr.mxu0 0.0
    %306 = vmatpush1.msra.mxu0 0.0
    %307 = vmatprep.subr.mxu0 0.0
    %308 = vmatpush1.msra.mxu0 0.0
    %309 = vmatprep.subr.mxu0 0.0
    %310 = vmatpush1.msra.mxu0 0.0
    %311 = vmatprep.subr.mxu0 0.0
    %312 = vmatpush1.msra.mxu0 0.0
    %313 = vmatprep.subr.mxu0 0.0
    %314 = vmatpush1.msra.mxu0 0.0
    %315 = vmatprep.subr.mxu0 0.0
    %316 = vmatpush1.msra.mxu0 0.0
    %317 = vmatprep.subr.mxu0 0.0
    %318 = vmatpush1.msra.mxu0 0.0
    %319 = vmatprep.subr.mxu0 0.0
    %320 = vmatpush1.msra.mxu0 0.0
    %321 = vmatprep.subr.mxu0 0.0
    %322 = vmatpush1.msra.mxu0 0.0
    %323 = vmatprep.subr.mxu0 0.0
    %324 = vmatpush1.msra.mxu0 0.0
    %325 = vmatprep.subr.mxu0 0.0
    %326 = vmatpush1.msra.mxu0 0.0
    %327 = vmatprep.subr.mxu0 0.0
    %328 = vmatpush1.msra.mxu0 0.0
    %329 = vmatprep.mubr.f32.mxu0 0.0
    %330 = vmatmul.mubr.f32.gmra.mrb[0].mxu0 %v256
    %v331 = vpop.f32.mrb[0].mxu0
    %v332 = vadd.f32 0.0, %v331
    %v333 = vpop.f32.mrb[0].mxu0
    %334 = vmatprep.mubr.f32.mxu0 0.0
    %335 = vmatmul.mubr.f32.gmra.mrb[0].mxu0 %v259
    %v336 = vpop.f32.mrb[0].mxu0
    %v337 = vadd.f32 0.0, %v336
    %v338 = vpop.f32.mrb[0].mxu0
    %339 = vdwg.mxu0
    %342 = vrot.lane.b32.xlu0 %v332, 96
    %v343 = vpop.permute.xlu0 %342
    %344 = vrot.lane.b32.xlu0 %v337, 96
    %v345 = vpop.permute.xlu0 %344
    %v348 = vrcp.pop %v343
    %v349 = vmul.f32 %v332, %v348
    %v350 = vrcp.pop %v345
    %v351 = vmul.f32 %v337, %v350
    %v352 = vld [vmem:[%s5] sm:$0xff]
    %v353 = vld [vmem:[%s5 + $0x8] sm:$0xff]
    %v354 = vld [vmem:[%s5 + $0x10] sm:$0xff]
    %v355 = vld [vmem:[%s5 + $0x18] sm:$0xff]
    %v356 = vld [vmem:[%s6] sm:$0x1]
    %v358 = vlaneseq
    %v359 = vshrl.u32 %v358, 7
    %v360 = vsub.s32 0, %v359
    %v361 = vrot.slane %v356, %v360
    %v364 = vsel %vm64, %v349, 0
    %v367 = vsel %vm64, %v351, 0
    %369 = vmatprep.subr.mxu0 0.0
    %370 = vmatpush1.msra.mxu0 %v352
    %371 = vmatprep.subr.mxu0 0.0
    %372 = vmatpush1.msra.mxu0 %v353
    %373 = vmatprep.subr.mxu0 0.0
    %374 = vmatpush1.msra.mxu0 %v354
    %375 = vmatprep.subr.mxu0 0.0
    %376 = vmatpush1.msra.mxu0 %v355
    %377 = vmatprep.subr.mxu0 0.0
    %378 = vmatpush1.msra.mxu0 0.0
    %379 = vmatprep.subr.mxu0 0.0
    %380 = vmatpush1.msra.mxu0 0.0
    %381 = vmatprep.subr.mxu0 0.0
    %382 = vmatpush1.msra.mxu0 0.0
    %383 = vmatprep.subr.mxu0 0.0
    %384 = vmatpush1.msra.mxu0 0.0
    %385 = vmatprep.subr.mxu0 0.0
    %386 = vmatpush1.msra.mxu0 0.0
    %387 = vmatprep.subr.mxu0 0.0
    %388 = vmatpush1.msra.mxu0 0.0
    %389 = vmatprep.subr.mxu0 0.0
    %390 = vmatpush1.msra.mxu0 0.0
    %391 = vmatprep.subr.mxu0 0.0
    %392 = vmatpush1.msra.mxu0 0.0
    %393 = vmatprep.subr.mxu0 0.0
    %394 = vmatpush1.msra.mxu0 0.0
    %395 = vmatprep.subr.mxu0 0.0
    %396 = vmatpush1.msra.mxu0 0.0
    %397 = vmatprep.subr.mxu0 0.0
    %398 = vmatpush1.msra.mxu0 0.0
    %399 = vmatprep.subr.mxu0 0.0
    %400 = vmatpush1.msra.mxu0 0.0
    %401 = vmatprep.subr.mxu0 0.0
    %402 = vmatpush1.msra.mxu0 0.0
    %403 = vmatprep.subr.mxu0 0.0
    %404 = vmatpush1.msra.mxu0 0.0
    %405 = vmatprep.subr.mxu0 0.0
    %406 = vmatpush1.msra.mxu0 0.0
    %407 = vmatprep.subr.mxu0 0.0
    %408 = vmatpush1.msra.mxu0 0.0
    %409 = vmatprep.subr.mxu0 0.0
    %410 = vmatpush1.msra.mxu0 0.0
    %411 = vmatprep.subr.mxu0 0.0
    %412 = vmatpush1.msra.mxu0 0.0
    %413 = vmatprep.subr.mxu0 0.0
    %414 = vmatpush1.msra.mxu0 0.0
    %415 = vmatprep.subr.mxu0 0.0
    %416 = vmatpush1.msra.mxu0 0.0
    %417 = vmatprep.subr.mxu0 0.0
    %418 = vmatpush1.msra.mxu0 0.0
    %419 = vmatprep.subr.mxu0 0.0
    %420 = vmatpush1.msra.mxu0 0.0
    %421 = vmatprep.subr.mxu0 0.0
    %422 = vmatpush1.msra.mxu0 0.0
    %423 = vmatprep.subr.mxu0 0.0
    %424 = vmatpush1.msra.mxu0 0.0
    %425 = vmatprep.subr.mxu0 0.0
    %426 = vmatpush1.msra.mxu0 0.0
    %427 = vmatprep.subr.mxu0 0.0
    %428 = vmatpush1.msra.mxu0 0.0
    %429 = vmatprep.subr.mxu0 0.0
    %430 = vmatpush1.msra.mxu0 0.0
    %431 = vmatprep.subr.mxu0 0.0
    %432 = vmatpush1.msra.mxu0 0.0
    %433 = vmatprep.mubr.f32.mxu0 0.0
    %434 = vmatmul.mubr.f32.gmra.mrb[0].mxu0 %v364
    %v435 = vpop.f32.mrb[0].mxu0
    %v436 = vadd.f32 %v361, %v435
    %v437 = vpop.f32.mrb[0].mxu0
    %438 = vmatprep.mubr.f32.mxu0 0.0
    %439 = vmatmul.mubr.f32.gmra.mrb[0].mxu0 %v367
    %v440 = vpop.f32.mrb[0].mxu0
    %v441 = vadd.f32 %v361, %v440
    %v442 = vpop.f32.mrb[0].mxu0
    %443 = vdwg.mxu0
    %v444 = vadd.f32 %v51, %v436
    %v445 = vadd.f32 %v52, %v441
    %v446 = vsel %vm64, %v444, 0.0
    %447 = vadd.xlane.f32.xlu0 %v446
    %v448 = vpop.xlane.xlu0 %447
    %v449 = vsel %vm64, %v445, 0.0
    %450 = vadd.xlane.f32.xlu0 %v449
    %v451 = vpop.xlane.xlu0 %450
    %v452 = vrcp.pop 32.0
    %v453 = vmul.f32 %v448, %v452
    %v454 = vmul.f32 %v451, %v452
    %v455 = vsub.f32 %v444, %v453
    %v456 = vsub.f32 %v445, %v454
    %v457 = vmul.f32 %v455, %v455
    %v458 = vmul.f32 %v456, %v456
    %v459 = vsel %vm64, %v457, 0.0
    %460 = vadd.xlane.f32.xlu0 %v459
    %v461 = vpop.xlane.xlu0 %460
    %v462 = vsel %vm64, %v458, 0.0
    %463 = vadd.xlane.f32.xlu0 %v462
    %v464 = vpop.xlane.xlu0 %463
    %v465 = vmul.f32 %v461, %v452
    %v466 = vmul.f32 %v464, %v452
    %v467 = vadd.f32 %v465, 1e-05
    %v468 = vadd.f32 %v466, 1e-05
    %v469 = vrsqrt.pop %v467
    %v470 = vrsqrt.pop %v468
    %v471 = vmul.f32 %v455, %v469
    %v472 = vmul.f32 %v456, %v470
    %v473 = vld [vmem:[%s7] sm:$0x1]
    %v475 = vlaneseq
    %v476 = vshrl.u32 %v475, 7
    %v477 = vsub.s32 0, %v476
    %v478 = vrot.slane %v473, %v477
    %v480 = vmul.f32 %v471, %v478
    %v481 = vmul.f32 %v472, %v478
    %v482 = vld [vmem:[%s8] sm:$0x1]
    %v484 = vlaneseq
    %v485 = vshrl.u32 %v484, 7
    %v486 = vsub.s32 0, %v485
    %v487 = vrot.slane %v482, %v486
    %v489 = vadd.f32 %v480, %v487
    %v490 = vadd.f32 %v481, %v487
    %v491 = vld [vmem:[%s9] sm:$0xff]
    %v492 = vld [vmem:[%s9 + $0x8] sm:$0xff]
    %v493 = vld [vmem:[%s9 + $0x10] sm:$0xff]
    %v494 = vld [vmem:[%s9 + $0x18] sm:$0xff]
    %v495 = vld [vmem:[%s10] sm:$0x1]
    %v497 = vlaneseq
    %v498 = vshrl.u32 %v497, 7
    %v499 = vsub.s32 0, %v498
    %v500 = vrot.slane %v495, %v499
    %v503 = vsel %vm64, %v489, 0
    %v506 = vsel %vm64, %v490, 0
    %508 = vmatprep.subr.mxu0 0.0
    %509 = vmatpush1.msra.mxu0 %v491
    %510 = vmatprep.subr.mxu0 0.0
    %511 = vmatpush1.msra.mxu0 %v492
    %512 = vmatprep.subr.mxu0 0.0
    %513 = vmatpush1.msra.mxu0 %v493
    %514 = vmatprep.subr.mxu0 0.0
    %515 = vmatpush1.msra.mxu0 %v494
    %516 = vmatprep.subr.mxu0 0.0
    %517 = vmatpush1.msra.mxu0 0.0
    %518 = vmatprep.subr.mxu0 0.0
    %519 = vmatpush1.msra.mxu0 0.0
    %520 = vmatprep.subr.mxu0 0.0
    %521 = vmatpush1.msra.mxu0 0.0
    %522 = vmatprep.subr.mxu0 0.0
    %523 = vmatpush1.msra.mxu0 0.0
    %524 = vmatprep.subr.mxu0 0.0
    %525 = vmatpush1.msra.mxu0 0.0
    %526 = vmatprep.subr.mxu0 0.0
    %527 = vmatpush1.msra.mxu0 0.0
    %528 = vmatprep.subr.mxu0 0.0
    %529 = vmatpush1.msra.mxu0 0.0
    %530 = vmatprep.subr.mxu0 0.0
    %531 = vmatpush1.msra.mxu0 0.0
    %532 = vmatprep.subr.mxu0 0.0
    %533 = vmatpush1.msra.mxu0 0.0
    %534 = vmatprep.subr.mxu0 0.0
    %535 = vmatpush1.msra.mxu0 0.0
    %536 = vmatprep.subr.mxu0 0.0
    %537 = vmatpush1.msra.mxu0 0.0
    %538 = vmatprep.subr.mxu0 0.0
    %539 = vmatpush1.msra.mxu0 0.0
    %540 = vmatprep.subr.mxu0 0.0
    %541 = vmatpush1.msra.mxu0 0.0
    %542 = vmatprep.subr.mxu0 0.0
    %543 = vmatpush1.msra.mxu0 0.0
    %544 = vmatprep.subr.mxu0 0.0
    %545 = vmatpush1.msra.mxu0 0.0
    %546 = vmatprep.subr.mxu0 0.0
    %547 = vmatpush1.msra.mxu0 0.0
    %548 = vmatprep.subr.mxu0 0.0
    %549 = vmatpush1.msra.mxu0 0.0
    %550 = vmatprep.subr.mxu0 0.0
    %551 = vmatpush1.msra.mxu0 0.0
    %552 = vmatprep.subr.mxu0 0.0
    %553 = vmatpush1.msra.mxu0 0.0
    %554 = vmatprep.subr.mxu0 0.0
    %555 = vmatpush1.msra.mxu0 0.0
    %556 = vmatprep.subr.mxu0 0.0
    %557 = vmatpush1.msra.mxu0 0.0
    %558 = vmatprep.subr.mxu0 0.0
    %559 = vmatpush1.msra.mxu0 0.0
    %560 = vmatprep.subr.mxu0 0.0
    %561 = vmatpush1.msra.mxu0 0.0
    %562 = vmatprep.subr.mxu0 0.0
    %563 = vmatpush1.msra.mxu0 0.0
    %564 = vmatprep.subr.mxu0 0.0
    %565 = vmatpush1.msra.mxu0 0.0
    %566 = vmatprep.subr.mxu0 0.0
    %567 = vmatpush1.msra.mxu0 0.0
    %568 = vmatprep.subr.mxu0 0.0
    %569 = vmatpush1.msra.mxu0 0.0
    %570 = vmatprep.subr.mxu0 0.0
    %571 = vmatpush1.msra.mxu0 0.0
    %572 = vmatprep.mubr.f32.mxu0 0.0
    %573 = vmatmul.mubr.f32.gmra.mrb[0].mxu0 %v503
    %v574 = vpop.f32.mrb[0].mxu0
    %v575 = vadd.f32 %v500, %v574
    %v576 = vpop.f32.mrb[0].mxu0
    %577 = vmatprep.mubr.f32.mxu0 0.0
    %578 = vmatmul.mubr.f32.gmra.mrb[0].mxu0 %v506
    %v579 = vpop.f32.mrb[0].mxu0
    %v580 = vadd.f32 %v500, %v579
    %v581 = vpop.f32.mrb[0].mxu0
    %582 = vdwg.mxu0
    %v583 = vmax.f32 %v575, 0.0
    %v584 = vmax.f32 %v580, 0.0
    %v585 = vld [vmem:[%s11] sm:$0xff]
    %v586 = vld [vmem:[%s11 + $0x8] sm:$0xff]
    %v587 = vld [vmem:[%s11 + $0x10] sm:$0xff]
    %v588 = vld [vmem:[%s11 + $0x18] sm:$0xff]
    %v589 = vld [vmem:[%s11 + $0x20] sm:$0xff]
    %v590 = vld [vmem:[%s11 + $0x28] sm:$0xff]
    %v591 = vld [vmem:[%s11 + $0x30] sm:$0xff]
    %v592 = vld [vmem:[%s11 + $0x38] sm:$0xff]
    %v593 = vld [vmem:[%s12] sm:$0x1]
    %v595 = vlaneseq
    %v596 = vshrl.u32 %v595, 7
    %v597 = vsub.s32 0, %v596
    %v598 = vrot.slane %v593, %v597
    %vm600 = vcmask 523264
    %v602 = vsel %vm600, %v583, 0
    %v605 = vsel %vm600, %v584, 0
    %607 = vmatprep.subr.mxu0 0.0
    %608 = vmatpush1.msra.mxu0 %v585
    %609 = vmatprep.subr.mxu0 0.0
    %610 = vmatpush1.msra.mxu0 %v586
    %611 = vmatprep.subr.mxu0 0.0
    %612 = vmatpush1.msra.mxu0 %v587
    %613 = vmatprep.subr.mxu0 0.0
    %614 = vmatpush1.msra.mxu0 %v588
    %615 = vmatprep.subr.mxu0 0.0
    %616 = vmatpush1.msra.mxu0 %v589
    %617 = vmatprep.subr.mxu0 0.0
    %618 = vmatpush1.msra.mxu0 %v590
    %619 = vmatprep.subr.mxu0 0.0
    %620 = vmatpush1.msra.mxu0 %v591
    %621 = vmatprep.subr.mxu0 0.0
    %622 = vmatpush1.msra.mxu0 %v592
    %623 = vmatprep.subr.mxu0 0.0
    %624 = vmatpush1.msra.mxu0 0.0
    %625 = vmatprep.subr.mxu0 0.0
    %626 = vmatpush1.msra.mxu0 0.0
    %627 = vmatprep.subr.mxu0 0.0
    %628 = vmatpush1.msra.mxu0 0.0
    %629 = vmatprep.subr.mxu0 0.0
    %630 = vmatpush1.msra.mxu0 0.0
    %631 = vmatprep.subr.mxu0 0.0
    %632 = vmatpush1.msra.mxu0 0.0
    %633 = vmatprep.subr.mxu0 0.0
    %634 = vmatpush1.msra.mxu0 0.0
    %635 = vmatprep.subr.mxu0 0.0
    %636 = vmatpush1.msra.mxu0 0.0
    %637 = vmatprep.subr.mxu0 0.0
    %638 = vmatpush1.msra.mxu0 0.0
    %639 = vmatprep.subr.mxu0 0.0
    %640 = vmatpush1.msra.mxu0 0.0
    %641 = vmatprep.subr.mxu0 0.0
    %642 = vmatpush1.msra.mxu0 0.0
    %643 = vmatprep.subr.mxu0 0.0
    %644 = vmatpush1.msra.mxu0 0.0
    %645 = vmatprep.subr.mxu0 0.0
    %646 = vmatpush1.msra.mxu0 0.0
    %647 = vmatprep.subr.mxu0 0.0
    %648 = vmatpush1.msra.mxu0 0.0
    %649 = vmatprep.subr.mxu0 0.0
    %650 = vmatpush1.msra.mxu0 0.0
    %651 = vmatprep.subr.mxu0 0.0
    %652 = vmatpush1.msra.mxu0 0.0
    %653 = vmatprep.subr.mxu0 0.0
    %654 = vmatpush1.msra.mxu0 0.0
    %655 = vmatprep.subr.mxu0 0.0
    %656 = vmatpush1.msra.mxu0 0.0
    %657 = vmatprep.subr.mxu0 0.0
    %658 = vmatpush1.msra.mxu0 0.0
    %659 = vmatprep.subr.mxu0 0.0
    %660 = vmatpush1.msra.mxu0 0.0
    %661 = vmatprep.subr.mxu0 0.0
    %662 = vmatpush1.msra.mxu0 0.0
    %663 = vmatprep.subr.mxu0 0.0
    %664 = vmatpush1.msra.mxu0 0.0
    %665 = vmatprep.subr.mxu0 0.0
    %666 = vmatpush1.msra.mxu0 0.0
    %667 = vmatprep.subr.mxu0 0.0
    %668 = vmatpush1.msra.mxu0 0.0
    %669 = vmatprep.subr.mxu0 0.0
    %670 = vmatpush1.msra.mxu0 0.0
    %671 = vmatprep.mubr.f32.mxu0 0.0
    %672 = vmatmul.mubr.f32.gmra.mrb[0].mxu0 %v602
    %v673 = vpop.f32.mrb[0].mxu0
    %v674 = vadd.f32 %v598, %v673
    %v675 = vpop.f32.mrb[0].mxu0
    %676 = vmatprep.mubr.f32.mxu0 0.0
    %677 = vmatmul.mubr.f32.gmra.mrb[0].mxu0 %v605
    %v678 = vpop.f32.mrb[0].mxu0
    %v679 = vadd.f32 %v598, %v678
    %v680 = vpop.f32.mrb[0].mxu0
    %681 = vdwg.mxu0
    %v682 = vadd.f32 %v489, %v674
    %v683 = vadd.f32 %v490, %v679
    %v684 = vsel %vm64, %v682, 0.0
    %685 = vadd.xlane.f32.xlu0 %v684
    %v686 = vpop.xlane.xlu0 %685
    %v687 = vsel %vm64, %v683, 0.0
    %688 = vadd.xlane.f32.xlu0 %v687
    %v689 = vpop.xlane.xlu0 %688
    %v690 = vmul.f32 %v686, %v452
    %v691 = vmul.f32 %v689, %v452
    %v692 = vsub.f32 %v682, %v690
    %v693 = vsub.f32 %v683, %v691
    %v694 = vmul.f32 %v692, %v692
    %v695 = vmul.f32 %v693, %v693
    %v696 = vsel %vm64, %v694, 0.0
    %697 = vadd.xlane.f32.xlu0 %v696
    %v698 = vpop.xlane.xlu0 %697
    %v699 = vsel %vm64, %v695, 0.0
    %700 = vadd.xlane.f32.xlu0 %v699
    %v701 = vpop.xlane.xlu0 %700
    %v702 = vmul.f32 %v698, %v452
    %v703 = vmul.f32 %v701, %v452
    %v704 = vadd.f32 %v702, 1e-05
    %v705 = vadd.f32 %v703, 1e-05
    %v706 = vrsqrt.pop %v704
    %v707 = vrsqrt.pop %v705
    %v708 = vmul.f32 %v692, %v706
    %v709 = vmul.f32 %v693, %v707
    %v710 = vld [vmem:[%s13] sm:$0x1]
    %v712 = vlaneseq
    %v713 = vshrl.u32 %v712, 7
    %v714 = vsub.s32 0, %v713
    %v715 = vrot.slane %v710, %v714
    %v717 = vmul.f32 %v708, %v715
    %v718 = vmul.f32 %v709, %v715
    %v719 = vld [vmem:[%s14] sm:$0x1]
    %v721 = vlaneseq
    %v722 = vshrl.u32 %v721, 7
    %v723 = vsub.s32 0, %v722
    %v724 = vrot.slane %v719, %v723
    %v726 = vadd.f32 %v717, %v724
    %v727 = vadd.f32 %v718, %v724
    %728 = vst.msk [vmem:[#allocation2] sm:$0xff] %vm64, %v726
    %729 = vst.msk [vmem:[#allocation2 + $0x8] sm:$0xff] %vm64, %v727
    // Predicated region
    $region62: #{tpu_custom_call.1} parent=1 // pred_check
      _
    $region63: #{tpu_custom_call.1} parent=1 // pred_check_branch
      %731 = sbr.rel (0) target = $region65
    $region64: #{tpu_custom_call.1} parent=1 // pred_region
      %s733 = ssub.s32 256, 256
      %734 = vsyncadd [#allocation3], %s733
      %s735 = sshll.u32 [#allocation2], 4
      %s736 = int_to_ptr.vmem [resolvable:$true] %s735
      %741 = dma.vmem_to_hbm [thread:$0]  %s736, 256, %s15, [#allocation3], 128, 128, 8
    $region65: #{tpu_custom_call.1} parent=1 // pred_fallthru
      _
    // Predicated region
    $region66: #{tpu_custom_call.1} parent=1 // pred_check
      _
    $region67: #{tpu_custom_call.1} parent=1 // pred_check_branch
      %743 = sbr.rel (0) target = $region69
    $region68: #{tpu_custom_call.1} parent=1 // pred_region
      %744 = dma.done [#allocation3], 256
    $region69: #{tpu_custom_call.1} parent=1 // pred_fallthru
      _
    %745 = vsyncpa [#allocation3], 1

</llo_original>
